<compile_context>
chip_gen: v6e
topology: v6e:2x2x1
jax: 0.10.0
libtpu: 0.0.40
codegen_flags: <defaults>
</compile_context>

<pallas_src>
import functools
import math

import numpy as np

import jax
import jax.numpy as jnp
from jax.experimental import pallas as pl
from jax.experimental.pallas import tpu as pltpu


def _round_up(x, m):
    return ((x + m - 1) // m) * m


# -----------------------------------------------------------------------------
# Kernel: grid = (batch tiles, class tiles); class axis is the online-LSE axis.
#   inputs : x_hat (tn, Dpad)  pre-L2-normalised features (compute dtype)
#            w_t   (Dpad, tc)  raw classifier columns     (compute dtype)
#            cs    (1, tc)     scale / max(||w_j||, 1e-8), 0 on padded cols
#            cb    (1, tc)     0 on valid cols, -1e30 on padded cols
#            lab   (tn, 1)     int32 labels
#   outputs: logits (tn, tc)   scale*(cos - onehot*margin)  (logits_dtype)
#            cos_t  (tn, 1)    target-class cosine (finalize only)
#            loss   (tn, 1)    per-sample cross-entropy (finalize only)
#            corr   (tn, 1)    1.0 if target is top-1 (finalize only)
#   scratch: running max m, running sum-exp l, running scale*cos_target
# -----------------------------------------------------------------------------
def _cosface_kernel(x_ref, w_ref, cs_ref, cb_ref, lab_ref,
                    logits_ref, cos_t_ref, loss_ref, corr_ref,
                    m_ref, l_ref, ct_ref,
                    *, scale, margin):
    k = pl.program_id(1)
    k_last = pl.num_programs(1) - 1
    tc = logits_ref.shape[1]

    @pl.when(k == 0)
    def _init():
        m_ref[...] = jnp.full_like(m_ref, -jnp.inf)
        l_ref[...] = jnp.zeros_like(l_ref)
        ct_ref[...] = jnp.zeros_like(ct_ref)

    # MXU: (tn, D) x (D, tc) -> f32 accumulator, raw bf16 weights.
    acc = jnp.dot(x_ref[...], w_ref[...], preferred_element_type=jnp.float32)

    # Post-matmul per-class scaling (CosFace scale folded with 1/||w_j||),
    # plus -1e30 bias on padded class columns (masks them from max / LSE).
    out = acc * cs_ref[...] + cb_ref[...]                      # (tn, tc) f32

    # onehot via (1, tc) class ids broadcast against (tn, 1) labels.
    class_ids = k * tc + jax.lax.broadcasted_iota(jnp.int32, (1, tc), 1)
    onehot = class_ids == lab_ref[...]                         # (tn, tc) bool

    margin_s = scale * margin
    out_final = jnp.where(onehot, out - margin_s, out)         # CosFace logits
    logits_ref[...] = out_final.astype(logits_ref.dtype)

    # accumulate scale*cosine at the target class (hits exactly one C tile)
    ct_ref[...] += jnp.sum(jnp.where(onehot, out, 0.0), axis=1, keepdims=True)

    # --- online logsumexp over the class axis ---
    tile_max = jnp.max(out_final, axis=1, keepdims=True)       # (tn, 1)
    m_prev = m_ref[...]
    m_new = jnp.maximum(m_prev, tile_max)
    l_ref[...] = (l_ref[...] * jnp.exp(m_prev - m_new)
                  + jnp.sum(jnp.exp(out_final - m_new), axis=1, keepdims=True))
    m_ref[...] = m_new

    @pl.when(k == k_last)
    def _finalize():
        lse = m_ref[...] + jnp.log(l_ref[...])                 # (tn, 1)
        out_tgt = ct_ref[...] - margin_s                       # scale*(cos_t - margin)
        cos_t_ref[...] = ct_ref[...] * (1.0 / scale)
        loss_ref[...] = lse - out_tgt                          # per-sample CE
        # TODO(synk): `accuracy(...)` is undefined in the reference source;
        # standard top-1 (percent) is used: target is top-1 iff its logit
        # equals the running max (exact ties count as correct).
        corr_ref[...] = (out_tgt >= m_ref[...]).astype(jnp.float32)


# -----------------------------------------------------------------------------
# Wrapper
# -----------------------------------------------------------------------------
def margin_cosine_product_loss(feature, label, weight, *, scale, margin,
                               with_theta=True, compute_dtype=jnp.bfloat16,
                               logits_dtype=jnp.bfloat16,
                               class_tile=1024, batch_tile=512):
    """CosFace forward.  feature (N, D), label (N,) int, weight (C, D)."""
    n, d = feature.shape
    c, d2 = weight.shape
    assert d == d2

    lane = 128
    sublane = 16                        # bf16 packing (also a multiple of 8)
    d_pad = _round_up(d, lane)
    tn = min(_round_up(batch_tile, sublane), _round_up(max(n, 1), sublane))
    n_pad = _round_up(n, tn)
    nb = n_pad // tn
    tc = min(_round_up(class_tile, lane), _round_up(c, lane))
    c_pad = _round_up(c, tc)
    kc = c_pad // tc

    # Features: L2-normalised in f32 (O(N*D)), padded, cast to compute dtype.
    # TODO(synk): reference clamps the product ||x||*||w|| at 1e-8; here each
    # factor is clamped separately (identical for non-degenerate inputs).
    x32 = feature.astype(jnp.float32)
    x_norm = jnp.sqrt(jnp.sum(x32 * x32, axis=1, keepdims=True))
    x_hat = x32 / jnp.maximum(x_norm, 1e-8)
    x_hat = jnp.pad(x_hat, ((0, n_pad - n), (0, d_pad - d))).astype(compute_dtype)

    # Classifier: pre-transposed to (D, C), padded, raw bf16 for the MXU.
    w32 = weight.astype(jnp.float32)
    w_t = jnp.pad(w32.T, ((0, d_pad - d), (0, c_pad - c))).astype(compute_dtype)

    # Per-class post-matmul column scale (f32 norms) + padded-column bias.
    w_norm = jnp.sqrt(jnp.sum(w32 * w32, axis=1))                      # (C,)
    col_scale = (float(scale) / jnp.maximum(w_norm, 1e-8)).reshape(1, c)
    col_scale = jnp.pad(col_scale, ((0, 0), (0, c_pad - c)))           # 0 on pad
    col_bias = jnp.pad(jnp.zeros((1, c), jnp.float32),
                       ((0, 0), (0, c_pad - c)), constant_values=-1e30)

    lab_col = jnp.pad(label.reshape(n, 1).astype(jnp.int32),
                      ((0, n_pad - n), (0, 0)))

    kernel = functools.partial(_cosface_kernel, scale=float(scale),
                               margin=float(margin))

    grid_spec = pltpu.PrefetchScalarGridSpec(
        num_scalar_prefetch=0,
        grid=(nb, kc),
        in_specs=[
            pl.BlockSpec((tn, d_pad), lambda i, k: (i, 0)),   # features (resident over k)
            pl.BlockSpec((d_pad, tc), lambda i, k: (0, k)),   # classifier C-tile
            pl.BlockSpec((1, tc), lambda i, k: (0, k)),       # column scale
            pl.BlockSpec((1, tc), lambda i, k: (0, k)),       # column bias
            pl.BlockSpec((tn, 1), lambda i, k: (i, 0)),       # labels
        ],
        out_specs=(
            pl.BlockSpec((tn, tc), lambda i, k: (i, k)),      # logits (lane-dense)
            pl.BlockSpec((tn, 1), lambda i, k: (i, 0)),       # target cosine
            pl.BlockSpec((tn, 1), lambda i, k: (i, 0)),       # per-sample loss
            pl.BlockSpec((tn, 1), lambda i, k: (i, 0)),       # per-sample correct
        ),
        scratch_shapes=[
            pltpu.VMEM((tn, 1), jnp.float32),                 # running max
            pltpu.VMEM((tn, 1), jnp.float32),                 # running sum-exp
            pltpu.VMEM((tn, 1), jnp.float32),                 # scale*cos at target
        ],
    )

    in_bytes = jnp.dtype(compute_dtype).itemsize
    out_bytes = jnp.dtype(logits_dtype).itemsize
    cost = pl.CostEstimate(
        flops=2 * n_pad * c_pad * d_pad,
        transcendentals=n_pad * c_pad,
        bytes_accessed=(n_pad * d_pad * in_bytes
                        + nb * c_pad * d_pad * in_bytes
                        + n_pad * c_pad * out_bytes),
    )

    logits_p, cos_t_p, loss_p, corr_p = pl.pallas_call(
        kernel,
        grid_spec=grid_spec,
        out_shape=(
            jax.ShapeDtypeStruct((n_pad, c_pad), logits_dtype),
            jax.ShapeDtypeStruct((n_pad, 1), jnp.float32),
            jax.ShapeDtypeStruct((n_pad, 1), jnp.float32),
            jax.ShapeDtypeStruct((n_pad, 1), jnp.float32),
        ),
        compiler_params=pltpu.CompilerParams(
            dimension_semantics=("parallel", "arbitrary"),    # batch x class(LSE)
            vmem_limit_bytes=32 * 1024 * 1024,
        ),
        cost_estimate=cost,
    )(x_hat, w_t, col_scale, col_bias, lab_col)

    logits = logits_p[:n, :c]
    loss = jnp.sum(loss_p[:n, 0]) / n
    top1 = 100.0 * jnp.sum(corr_p[:n, 0]) / n
    result = {"logits": logits, "loss": loss, "top1": top1}
    if with_theta:
        cos_t = jnp.clip(cos_t_p[:n, 0], -1.0, 1.0)
        # TODO(synk): reference builds thetas as a Python list via .item();
        # returned here as a JAX array of degrees.
        result["thetas"] = jnp.degrees(jnp.arccos(cos_t))
    return result


# -----------------------------------------------------------------------------
# Demo / self-check
# -----------------------------------------------------------------------------
if __name__ == "__main__":
    key = jax.random.PRNGKey(0)
    N, D, C = 8, 32, 16                       # batch, in_features, out_features
    SCALE, MARGIN = 30.0, 0.35

    k_x, k_w, k_l = jax.random.split(key, 3)
    feature = jax.random.normal(k_x, (N, D), dtype=jnp.float32)
    stdv = 1.0 / math.sqrt(D)                 # reset_parameters(): U(-stdv, stdv)
    weight = jax.random.uniform(k_w, (C, D), minval=-stdv, maxval=stdv,
                                dtype=jnp.float32)
    label = jax.random.randint(k_l, (N,), 0, C, dtype=jnp.int32)

    out = margin_cosine_product_loss(feature, label, weight,
                                     scale=SCALE, margin=MARGIN, with_theta=True)
    out = jax.block_until_ready(out)

    # pure-JAX f32 reference; loose tolerance absorbs the bf16 MXU / bf16 logits.
    ip = feature @ weight.T
    denom = jnp.maximum(jnp.linalg.norm(feature, axis=1)[:, None]
                        * jnp.linalg.norm(weight, axis=1)[None, :], 1e-8)
    cosine = ip / denom
    onehot = jax.nn.one_hot(label, C, dtype=jnp.float32)
    ref_logits = SCALE * (cosine - onehot * MARGIN)
    ref_loss = jnp.mean(jax.nn.logsumexp(ref_logits, axis=1)
                        - jnp.sum(ref_logits * onehot, axis=1))
    ref_thetas = jnp.degrees(jnp.arccos(
        jnp.clip(cosine[jnp.arange(N), label], -1.0, 1.0)))

    got_logits = np.asarray(jnp.asarray(out["logits"], jnp.float32))
    assert np.max(np.abs(got_logits - np.asarray(ref_logits))) < 0.5
    assert abs(float(out["loss"]) - float(ref_loss)) < 0.5
    assert np.max(np.abs(np.asarray(out["thetas"]) - np.asarray(ref_thetas))) < 2.0
    assert 0.0 <= float(out["top1"]) <= 100.0
    print("KERNEL_OK")
</pallas_src>

<mosaic_0001>
module attributes {stable_mosaic.version = 11 : i64} {
  func.func @_cosface_kernel(%arg0: i32, %arg1: i32, %arg2: memref<16x128xbf16, #tpu.memory_space<vmem>>, %arg3: memref<128x128xbf16, #tpu.memory_space<vmem>>, %arg4: memref<1x128xf32, #tpu.memory_space<vmem>>, %arg5: memref<1x128xf32, #tpu.memory_space<vmem>>, %arg6: memref<16x1xi32, #tpu.memory_space<vmem>>, %arg7: memref<16x128xbf16, #tpu.memory_space<vmem>>, %arg8: memref<16x1xf32, #tpu.memory_space<vmem>>, %arg9: memref<16x1xf32, #tpu.memory_space<vmem>>, %arg10: memref<16x1xf32, #tpu.memory_space<vmem>>, %arg11: memref<16x1xf32, #tpu.memory_space<vmem>>, %arg12: memref<16x1xf32, #tpu.memory_space<vmem>>, %arg13: memref<16x1xf32, #tpu.memory_space<vmem>>) attributes {dimension_semantics = [#tpu.dimension_semantics<parallel>, #tpu.dimension_semantics<arbitrary>], iteration_bounds = array<i64: 1, 1>, scalar_prefetch = 0 : i64, scratch_operands = 3 : i64, tpu.core_type = #tpu.core_type<tc>, window_params = [{transform_indices = @transform_0, window_bounds = array<i64: 16, 128>}, {transform_indices = @transform_1, window_bounds = array<i64: 128, 128>}, {transform_indices = @transform_2, window_bounds = array<i64: 1, 128>}, {transform_indices = @transform_3, window_bounds = array<i64: 1, 128>}, {transform_indices = @transform_4, window_bounds = array<i64: 16, 1>}, {transform_indices = @transform_5, window_bounds = array<i64: 16, 128>}, {transform_indices = @transform_6, window_bounds = array<i64: 16, 1>}, {transform_indices = @transform_7, window_bounds = array<i64: 16, 1>}, {transform_indices = @transform_8, window_bounds = array<i64: 16, 1>}]} {
    %c0_i32 = arith.constant 0 : i32
    %0 = arith.cmpi eq, %arg1, %c0_i32 : i32
    %1 = arith.extui %0 : i1 to i32
    %c0_i32_0 = arith.constant 0 : i32
    %2 = arith.cmpi ne, %1, %c0_i32_0 : i32
    scf.if %2 {
      %cst_31 = arith.constant 0xFF800000 : f32
      %51 = vector.broadcast %cst_31 : f32 to vector<16x1xf32>
      %c0_32 = arith.constant 0 : index
      %c0_33 = arith.constant 0 : index
      %52 = vector.load %arg11[%c0_32, %c0_33] : memref<16x1xf32, #tpu.memory_space<vmem>>, vector<16x1xf32>
      tpu.vector_store %arg11[%c0_32, %c0_33], %51 {strides = array<i32>} : memref<16x1xf32, #tpu.memory_space<vmem>>, vector<16x1xf32>,
      %cst_34 = arith.constant 0.000000e+00 : f32
      %53 = vector.broadcast %cst_34 : f32 to vector<16x1xf32>
      %c0_35 = arith.constant 0 : index
      %c0_36 = arith.constant 0 : index
      %54 = vector.load %arg12[%c0_35, %c0_36] : memref<16x1xf32, #tpu.memory_space<vmem>>, vector<16x1xf32>
      tpu.vector_store %arg12[%c0_35, %c0_36], %53 {strides = array<i32>} : memref<16x1xf32, #tpu.memory_space<vmem>>, vector<16x1xf32>,
      %cst_37 = arith.constant 0.000000e+00 : f32
      %55 = vector.broadcast %cst_37 : f32 to vector<16x1xf32>
      %c0_38 = arith.constant 0 : index
      %c0_39 = arith.constant 0 : index
      %56 = vector.load %arg13[%c0_38, %c0_39] : memref<16x1xf32, #tpu.memory_space<vmem>>, vector<16x1xf32>
      tpu.vector_store %arg13[%c0_38, %c0_39], %55 {strides = array<i32>} : memref<16x1xf32, #tpu.memory_space<vmem>>, vector<16x1xf32>,
    } else {
    }
    %c0 = arith.constant 0 : index
    %c0_1 = arith.constant 0 : index
    %3 = vector.load %arg2[%c0, %c0_1] : memref<16x128xbf16, #tpu.memory_space<vmem>>, vector<16x128xbf16>
    %c0_2 = arith.constant 0 : index
    %c0_3 = arith.constant 0 : index
    %4 = vector.load %arg3[%c0_2, %c0_3] : memref<128x128xbf16, #tpu.memory_space<vmem>>, vector<128x128xbf16>
    %cst = arith.constant dense<0.000000e+00> : vector<16x128xf32>
    %5 = tpu.matmul %3, %4, %cst {dimension_numbers = #tpu.dot_dimension_numbers<[1], [0], [0], [1], [0, 0, 1, 1], [], []>} : vector<16x128xbf16>, vector<128x128xbf16>, vector<16x128xf32> -> vector<16x128xf32>
    %c0_4 = arith.constant 0 : index
    %c0_5 = arith.constant 0 : index
    %6 = vector.load %arg4[%c0_4, %c0_5] : memref<1x128xf32, #tpu.memory_space<vmem>>, vector<1x128xf32>
    %7 = vector.broadcast %6 : vector<1x128xf32> to vector<16x128xf32>
    %8 = arith.mulf %5, %7 : vector<16x128xf32>
    %c0_6 = arith.constant 0 : index
    %c0_7 = arith.constant 0 : index
    %9 = vector.load %arg5[%c0_6, %c0_7] : memref<1x128xf32, #tpu.memory_space<vmem>>, vector<1x128xf32>
    %10 = vector.broadcast %9 : vector<1x128xf32> to vector<16x128xf32>
    %11 = arith.addf %8, %10 : vector<16x128xf32>
    %c128_i32 = arith.constant 128 : i32
    %12 = arith.muli %arg1, %c128_i32 : i32
    %13 = tpu.iota {dimensions = array<i32: 1>} : vector<1x128xi32>
    %14 = vector.broadcast %12 : i32 to vector<1x128xi32>
    %15 = arith.addi %14, %13 : vector<1x128xi32>
    %c0_8 = arith.constant 0 : index
    %c0_9 = arith.constant 0 : index
    %16 = vector.load %arg6[%c0_8, %c0_9] : memref<16x1xi32, #tpu.memory_space<vmem>>, vector<16x1xi32>
    %17 = vector.broadcast %15 : vector<1x128xi32> to vector<16x128xi32>
    %18 = vector.broadcast %16 : vector<16x1xi32> to vector<16x128xi32>
    %19 = arith.cmpi eq, %17, %18 : vector<16x128xi32>
    %cst_10 = arith.constant 1.050000e+01 : f32
    %20 = vector.broadcast %cst_10 : f32 to vector<16x128xf32>
    %21 = arith.subf %11, %20 : vector<16x128xf32>
    %22 = arith.select %19, %21, %11 : vector<16x128xi1>, vector<16x128xf32>
    %23 = arith.truncf %22 : vector<16x128xf32> to vector<16x128xbf16>
    %c0_11 = arith.constant 0 : index
    %c0_12 = arith.constant 0 : index
    %24 = vector.load %arg7[%c0_11, %c0_12] : memref<16x128xbf16, #tpu.memory_space<vmem>>, vector<16x128xbf16>
    tpu.vector_store %arg7[%c0_11, %c0_12], %23 {strides = array<i32>} : memref<16x128xbf16, #tpu.memory_space<vmem>>, vector<16x128xbf16>,
    %c0_13 = arith.constant 0 : index
    %c0_14 = arith.constant 0 : index
    %25 = vector.load %arg13[%c0_13, %c0_14] : memref<16x1xf32, #tpu.memory_space<vmem>>, vector<16x1xf32>
    %cst_15 = arith.constant 0.000000e+00 : f32
    %26 = vector.broadcast %cst_15 : f32 to vector<16x128xf32>
    %27 = arith.select %19, %11, %26 : vector<16x128xi1>, vector<16x128xf32>
    %cst_16 = arith.constant dense<0.000000e+00> : vector<16xf32>
    %28 = vector.multi_reduction <add>, %27, %cst_16 [1] : vector<16x128xf32> to vector<16xf32>
    %29 = vector.shape_cast %28 : vector<16xf32> to vector<16x1xf32>
    %30 = arith.addf %25, %29 : vector<16x1xf32>
    %c0_17 = arith.constant 0 : index
    %c0_18 = arith.constant 0 : index
    %31 = vector.load %arg13[%c0_17, %c0_18] : memref<16x1xf32, #tpu.memory_space<vmem>>, vector<16x1xf32>
    tpu.vector_store %arg13[%c0_17, %c0_18], %30 {strides = array<i32>} : memref<16x1xf32, #tpu.memory_space<vmem>>, vector<16x1xf32>,
    %cst_19 = arith.constant dense<0xFF800000> : vector<16xf32>
    %32 = vector.multi_reduction <maximumf>, %22, %cst_19 [1] : vector<16x128xf32> to vector<16xf32>
    %33 = vector.shape_cast %32 : vector<16xf32> to vector<16x1xf32>
    %c0_20 = arith.constant 0 : index
    %c0_21 = arith.constant 0 : index
    %34 = vector.load %arg11[%c0_20, %c0_21] : memref<16x1xf32, #tpu.memory_space<vmem>>, vector<16x1xf32>
    %35 = arith.maximumf %34, %33 : vector<16x1xf32>
    %c0_22 = arith.constant 0 : index
    %c0_23 = arith.constant 0 : index
    %36 = vector.load %arg12[%c0_22, %c0_23] : memref<16x1xf32, #tpu.memory_space<vmem>>, vector<16x1xf32>
    %37 = arith.subf %34, %35 : vector<16x1xf32>
    %38 = math.exp %37 : vector<16x1xf32>
    %39 = arith.mulf %36, %38 : vector<16x1xf32>
    %40 = vector.broadcast %35 : vector<16x1xf32> to vector<16x128xf32>
    %41 = arith.subf %22, %40 : vector<16x128xf32>
    %42 = math.exp %41 : vector<16x128xf32>
    %cst_24 = arith.constant dense<0.000000e+00> : vector<16xf32>
    %43 = vector.multi_reduction <add>, %42, %cst_24 [1] : vector<16x128xf32> to vector<16xf32>
    %44 = vector.shape_cast %43 : vector<16xf32> to vector<16x1xf32>
    %45 = arith.addf %39, %44 : vector<16x1xf32>
    %c0_25 = arith.constant 0 : index
    %c0_26 = arith.constant 0 : index
    %46 = vector.load %arg12[%c0_25, %c0_26] : memref<16x1xf32, #tpu.memory_space<vmem>>, vector<16x1xf32>
    tpu.vector_store %arg12[%c0_25, %c0_26], %45 {strides = array<i32>} : memref<16x1xf32, #tpu.memory_space<vmem>>, vector<16x1xf32>,
    %c0_27 = arith.constant 0 : index
    %c0_28 = arith.constant 0 : index
    %47 = vector.load %arg11[%c0_27, %c0_28] : memref<16x1xf32, #tpu.memory_space<vmem>>, vector<16x1xf32>
    tpu.vector_store %arg11[%c0_27, %c0_28], %35 {strides = array<i32>} : memref<16x1xf32, #tpu.memory_space<vmem>>, vector<16x1xf32>,
    %c0_i32_29 = arith.constant 0 : i32
    %48 = arith.cmpi eq, %arg1, %c0_i32_29 : i32
    %49 = arith.extui %48 : i1 to i32
    %c0_i32_30 = arith.constant 0 : i32
    %50 = arith.cmpi ne, %49, %c0_i32_30 : i32
    scf.if %50 {
      %c0_31 = arith.constant 0 : index
      %c0_32 = arith.constant 0 : index
      %51 = vector.load %arg11[%c0_31, %c0_32] : memref<16x1xf32, #tpu.memory_space<vmem>>, vector<16x1xf32>
      %c0_33 = arith.constant 0 : index
      %c0_34 = arith.constant 0 : index
      %52 = vector.load %arg12[%c0_33, %c0_34] : memref<16x1xf32, #tpu.memory_space<vmem>>, vector<16x1xf32>
      %53 = math.log %52 : vector<16x1xf32>
      %54 = arith.addf %51, %53 : vector<16x1xf32>
      %c0_35 = arith.constant 0 : index
      %c0_36 = arith.constant 0 : index
      %55 = vector.load %arg13[%c0_35, %c0_36] : memref<16x1xf32, #tpu.memory_space<vmem>>, vector<16x1xf32>
      %cst_37 = arith.constant 1.050000e+01 : f32
      %56 = vector.broadcast %cst_37 : f32 to vector<16x1xf32>
      %57 = arith.subf %55, %56 : vector<16x1xf32>
      %c0_38 = arith.constant 0 : index
      %c0_39 = arith.constant 0 : index
      %58 = vector.load %arg13[%c0_38, %c0_39] : memref<16x1xf32, #tpu.memory_space<vmem>>, vector<16x1xf32>
      %cst_40 = arith.constant 0.0333333351 : f32
      %59 = vector.broadcast %cst_40 : f32 to vector<16x1xf32>
      %60 = arith.mulf %58, %59 : vector<16x1xf32>
      %c0_41 = arith.constant 0 : index
      %c0_42 = arith.constant 0 : index
      %61 = vector.load %arg8[%c0_41, %c0_42] : memref<16x1xf32, #tpu.memory_space<vmem>>, vector<16x1xf32>
      tpu.vector_store %arg8[%c0_41, %c0_42], %60 {strides = array<i32>} : memref<16x1xf32, #tpu.memory_space<vmem>>, vector<16x1xf32>,
      %62 = arith.subf %54, %57 : vector<16x1xf32>
      %c0_43 = arith.constant 0 : index
      %c0_44 = arith.constant 0 : index
      %63 = vector.load %arg9[%c0_43, %c0_44] : memref<16x1xf32, #tpu.memory_space<vmem>>, vector<16x1xf32>
      tpu.vector_store %arg9[%c0_43, %c0_44], %62 {strides = array<i32>} : memref<16x1xf32, #tpu.memory_space<vmem>>, vector<16x1xf32>,
      %c0_45 = arith.constant 0 : index
      %c0_46 = arith.constant 0 : index
      %64 = vector.load %arg11[%c0_45, %c0_46] : memref<16x1xf32, #tpu.memory_space<vmem>>, vector<16x1xf32>
      %65 = arith.cmpf oge, %57, %64 : vector<16x1xf32>
      %66 = arith.extui %65 : vector<16x1xi1> to vector<16x1xi32>
      %67 = arith.sitofp %66 : vector<16x1xi32> to vector<16x1xf32>
      %c0_47 = arith.constant 0 : index
      %c0_48 = arith.constant 0 : index
      %68 = vector.load %arg10[%c0_47, %c0_48] : memref<16x1xf32, #tpu.memory_space<vmem>>, vector<16x1xf32>
      tpu.vector_store %arg10[%c0_47, %c0_48], %67 {strides = array<i32>} : memref<16x1xf32, #tpu.memory_space<vmem>>, vector<16x1xf32>,
    } else {
    }
    return
  }
  func.func @transform_0(%arg0: i32, %arg1: i32) -> (i32, i32) {
    %c0_i32 = arith.constant 0 : i32
    %c0_i32_0 = arith.constant 0 : i32
    return %arg0, %c0_i32 : i32, i32
  }
  func.func @transform_1(%arg0: i32, %arg1: i32) -> (i32, i32) {
    %c0_i32 = arith.constant 0 : i32
    %c0_i32_0 = arith.constant 0 : i32
    return %c0_i32, %arg1 : i32, i32
  }
  func.func @transform_2(%arg0: i32, %arg1: i32) -> (i32, i32) {
    %c0_i32 = arith.constant 0 : i32
    %c0_i32_0 = arith.constant 0 : i32
    return %c0_i32, %arg1 : i32, i32
  }
  func.func @transform_3(%arg0: i32, %arg1: i32) -> (i32, i32) {
    %c0_i32 = arith.constant 0 : i32
    %c0_i32_0 = arith.constant 0 : i32
    return %c0_i32, %arg1 : i32, i32
  }
  func.func @transform_4(%arg0: i32, %arg1: i32) -> (i32, i32) {
    %c0_i32 = arith.constant 0 : i32
    %c0_i32_0 = arith.constant 0 : i32
    return %arg0, %c0_i32 : i32, i32
  }
  func.func @transform_5(%arg0: i32, %arg1: i32) -> (i32, i32) {
    %c0_i32 = arith.constant 0 : i32
    return %arg0, %arg1 : i32, i32
  }
  func.func @transform_6(%arg0: i32, %arg1: i32) -> (i32, i32) {
    %c0_i32 = arith.constant 0 : i32
    %c0_i32_0 = arith.constant 0 : i32
    return %arg0, %c0_i32 : i32, i32
  }
  func.func @transform_7(%arg0: i32, %arg1: i32) -> (i32, i32) {
    %c0_i32 = arith.constant 0 : i32
    %c0_i32_0 = arith.constant 0 : i32
    return %arg0, %c0_i32 : i32, i32
  }
  func.func @transform_8(%arg0: i32, %arg1: i32) -> (i32, i32) {
    %c0_i32 = arith.constant 0 : i32
    %c0_i32_0 = arith.constant 0 : i32
    return %arg0, %c0_i32 : i32, i32
  }
}

</mosaic_0001>

<llo_original>
// kernel: tpu_custom_call.1
$region0: #{tpu_custom_call.1}
  #allocation0 [shape = 'u32[]', space=smem, size = 0x4, offset = 0x4, fixed_abs, tag = 'smem constant byte address 0x4 - core index']
  #allocation1 [shape = 'u32[144,128]{1,0:T(1,128)}', space=vmem, size = 0x12000, scoped, tag = 'internal scratch']
  #allocation2 [shape = 'f32[16,1]{1,0:T(8,128)}', space=vmem, size = 0x2000, scoped, tag = 'scratch operand']
  #allocation3 [shape = 'f32[16,1]{1,0:T(8,128)}', space=vmem, size = 0x2000, scoped, tag = 'scratch operand']
  #allocation4 [shape = 'f32[16,1]{1,0:T(8,128)}', space=vmem, size = 0x2000, scoped, tag = 'scratch operand']
  %s0 = inlined_call_operand.vmem [shape: bf16[16,128], index: 0, kind: input, shape index: {}]
  %s1 = inlined_call_operand.hbm [shape: bf16[128,128], index: 1, kind: input, shape index: {}]
  %s2 = inlined_call_operand.vmem [shape: f32[1,128], index: 2, kind: input, shape index: {}]
  %s3 = inlined_call_operand.vmem [shape: f32[1,128], index: 3, kind: input, shape index: {}]
  %s4 = inlined_call_operand.vmem [shape: s32[16,1], index: 4, kind: input, shape index: {}]
  %s5 = inlined_call_operand.hbm [shape: bf16[16,128], index: 5, kind: output, shape index: {0}]
  %s6 = inlined_call_operand.vmem [shape: f32[16,1], index: 6, kind: output, shape index: {1}]
  %s7 = inlined_call_operand.vmem [shape: f32[16,1], index: 7, kind: output, shape index: {2}]
  %s8 = inlined_call_operand.vmem [shape: f32[16,1], index: 8, kind: output, shape index: {3}]
  %9 = xla_tuple %s5, %s6, %s7, %s8
  %s10 = sld [smem:[#allocation0]]
  $region66: #{tpu_custom_call.1} parent=0
    _
  %s12 = ssub.s32 1, %s10
  %s13 = scalar_select 0, %s12, %s10
  $region1: #{tpu_custom_call.1} parent=0
    #allocation5 [shape = 'u8[32768]{0}', space=vmem, size = 0x8000, scoped, tag = 'input window, operand 1, single buffered']
    #allocation6 [shape = 's32[1]{0}', space=sflag, size = 0x4, scoped, tag = 'scoped memory for tpu_custom_call.1']
    #allocation7 [shape = 's32[1]{0}', space=sflag, size = 0x4, scoped, tag = 'scoped memory for tpu_custom_call.1']
    #allocation8 [shape = 'u8[4096]{0}', space=vmem, size = 0x1000, scoped, tag = 'output window, operand 0, single buffered']
    %14 = vsyncpa [#allocation6], 0
    %15 = vsyncpa [#allocation7], 0
    // Predicated region
    $region2: #{tpu_custom_call.1} parent=1 // pred_check
      _
    $region3: #{tpu_custom_call.1} parent=1 // pred_check_branch
      %17 = sbr.rel (0) target = $region5
    $region4: #{tpu_custom_call.1} parent=1 // pred_region
      _
    $region5: #{tpu_custom_call.1} parent=1 // pred_fallthru
      _
    // Predicated region
    $region6: #{tpu_custom_call.1} parent=1 // pred_check
      _
    $region7: #{tpu_custom_call.1} parent=1 // pred_check_branch
      %19 = sbr.rel (0) target = $region9
    $region8: #{tpu_custom_call.1} parent=1 // pred_region
      %s21 = ssub.s32 1024, 1024
      %22 = vsyncadd [#allocation6], %s21
      %s23 = sshll.u32 [#allocation5], 4
      %s24 = int_to_ptr.vmem [resolvable:$true] %s23
      %29 = dma.hbm_to_vmem [thread:$0]  %s1, 1024, %s24, [#allocation6], 64, 64, 4
    $region9: #{tpu_custom_call.1} parent=1 // pred_fallthru
      _
    // Predicated region
    $region10: #{tpu_custom_call.1} parent=1 // pred_check
      _
    $region11: #{tpu_custom_call.1} parent=1 // pred_check_branch
      %31 = sbr.rel (0) target = $region13
    $region12: #{tpu_custom_call.1} parent=1 // pred_region
      _
    $region13: #{tpu_custom_call.1} parent=1 // pred_fallthru
      _
    // Predicated region
    $region14: #{tpu_custom_call.1} parent=1 // pred_check
      _
    $region15: #{tpu_custom_call.1} parent=1 // pred_check_branch
      %33 = sbr.rel (0) target = $region17
    $region16: #{tpu_custom_call.1} parent=1 // pred_region
      _
    $region17: #{tpu_custom_call.1} parent=1 // pred_fallthru
      _
    // Predicated region
    $region18: #{tpu_custom_call.1} parent=1 // pred_check
      _
    $region19: #{tpu_custom_call.1} parent=1 // pred_check_branch
      %35 = sbr.rel (0) target = $region21
    $region20: #{tpu_custom_call.1} parent=1 // pred_region
      _
    $region21: #{tpu_custom_call.1} parent=1 // pred_fallthru
      _
    // Predicated region
    $region22: #{tpu_custom_call.1} parent=1 // pred_check
      _
    $region23: #{tpu_custom_call.1} parent=1 // pred_check_branch
      %37 = sbr.rel (0) target = $region25
    $region24: #{tpu_custom_call.1} parent=1 // pred_region
      %38 = dma.done [#allocation6], 1024
    $region25: #{tpu_custom_call.1} parent=1 // pred_fallthru
      _
    %p40 = scmp.eq.s32.totalorder 0, 0
    // Predicated region
    $region26: #{tpu_custom_call.1} parent=1 // pred_check
      %p41 = pneg %p40
    $region27: #{tpu_custom_call.1} parent=1 // pred_check_branch
      %43 = sbr.rel (%p41) target = $region29
    $region28: #{tpu_custom_call.1} parent=1 // pred_region
      %vm44 = vcmask 7168
      %45 = vst.msk [vmem:[#allocation2] sm:$0xff] %vm44, -inf
      %46 = vst.msk [vmem:[#allocation2 + $0x8] sm:$0xff] %vm44, -inf
      %47 = vst.msk [vmem:[#allocation3] sm:$0xff] %vm44, 0.0
      %48 = vst.msk [vmem:[#allocation3 + $0x8] sm:$0xff] %vm44, 0.0
      %49 = vst.msk [vmem:[#allocation4] sm:$0xff] %vm44, 0.0
      %50 = vst.msk [vmem:[#allocation4 + $0x8] sm:$0xff] %vm44, 0.0
    $region29: #{tpu_custom_call.1} parent=1 // pred_fallthru
      _
    %v51 = vld [vmem:[%s0] sm:$0xf]
    %v52 = vld [vmem:[%s0 + $0x4] sm:$0xf]
    %v53 = vld [vmem:[#allocation5] sm:$0xf]
    %v54 = vld [vmem:[#allocation5 + $0x4] sm:$0xf]
    %v55 = vld [vmem:[#allocation5 + $0x8] sm:$0xf]
    %v56 = vld [vmem:[#allocation5 + $0xc] sm:$0xf]
    %v57 = vld [vmem:[#allocation5 + $0x10] sm:$0xf]
    %v58 = vld [vmem:[#allocation5 + $0x14] sm:$0xf]
    %v59 = vld [vmem:[#allocation5 + $0x18] sm:$0xf]
    %v60 = vld [vmem:[#allocation5 + $0x1c] sm:$0xf]
    %v61 = vld [vmem:[#allocation5 + $0x20] sm:$0xf]
    %v62 = vld [vmem:[#allocation5 + $0x24] sm:$0xf]
    %v63 = vld [vmem:[#allocation5 + $0x28] sm:$0xf]
    %v64 = vld [vmem:[#allocation5 + $0x2c] sm:$0xf]
    %v65 = vld [vmem:[#allocation5 + $0x30] sm:$0xf]
    %v66 = vld [vmem:[#allocation5 + $0x34] sm:$0xf]
    %v67 = vld [vmem:[#allocation5 + $0x38] sm:$0xf]
    %v68 = vld [vmem:[#allocation5 + $0x3c] sm:$0xf]
    %v71 = vunpack.c.l.b16 %v51
    %v72 = vunpack.c.l.b16 %v52
    %v73 = vpack.c.b16 %v72, %v71
    %v91 = vunpack.c.l.b16 %v53
    %v92 = vunpack.c.l.b16 %v54
    %v93 = vunpack.c.l.b16 %v55
    %v94 = vunpack.c.l.b16 %v56
    %v95 = vunpack.c.l.b16 %v57
    %v96 = vunpack.c.l.b16 %v58
    %v97 = vunpack.c.l.b16 %v59
    %v98 = vunpack.c.l.b16 %v60
    %v99 = vunpack.c.l.b16 %v61
    %v100 = vunpack.c.l.b16 %v62
    %v101 = vunpack.c.l.b16 %v63
    %v102 = vunpack.c.l.b16 %v64
    %v103 = vunpack.c.l.b16 %v65
    %v104 = vunpack.c.l.b16 %v66
    %v105 = vunpack.c.l.b16 %v67
    %v106 = vunpack.c.l.b16 %v68
    %v107 = vpack.c.b16 %v92, %v91
    %v108 = vpack.c.b16 %v94, %v93
    %v109 = vpack.c.b16 %v96, %v95
    %v110 = vpack.c.b16 %v98, %v97
    %v111 = vpack.c.b16 %v100, %v99
    %v112 = vpack.c.b16 %v102, %v101
    %v113 = vpack.c.b16 %v104, %v103
    %v114 = vpack.c.b16 %v106, %v105
    %123 = vmatprep.subr.bf16.mxu0 0
    %124 = vmatpush1.bf16.msra.mxu0 %v114
    %125 = vmatprep.subr.bf16.mxu0 0
    %126 = vmatpush1.bf16.msra.mxu0 %v113
    %127 = vmatprep.subr.bf16.mxu0 0
    %128 = vmatpush1.bf16.msra.mxu0 %v112
    %129 = vmatprep.subr.bf16.mxu0 0
    %130 = vmatpush1.bf16.msra.mxu0 %v111
    %131 = vmatprep.subr.bf16.mxu0 0
    %132 = vmatpush1.bf16.msra.mxu0 %v110
    %133 = vmatprep.subr.bf16.mxu0 0
    %134 = vmatpush1.bf16.msra.mxu0 %v109
    %135 = vmatprep.subr.bf16.mxu0 0
    %136 = vmatpush1.bf16.msra.mxu0 %v108
    %137 = vmatprep.subr.bf16.mxu0 0
    %138 = vmatpush1.bf16.msra.mxu0 %v107
    %139 = vmatprep.subr.bf16.mxu0 0
    %140 = vmatpush2.bf16.msra.mxu0 0
    %141 = vmatprep.subr.bf16.mxu0 0
    %142 = vmatpush2.bf16.msra.mxu0 0
    %143 = vmatprep.subr.bf16.mxu0 0
    %144 = vmatpush2.bf16.msra.mxu0 0
    %145 = vmatprep.subr.bf16.mxu0 0
    %146 = vmatpush2.bf16.msra.mxu0 0
    %147 = vmatprep.subr.bf16.mxu0 0
    %148 = vmatpush2.bf16.msra.mxu0 0
    %149 = vmatprep.subr.bf16.mxu0 0
    %150 = vmatpush2.bf16.msra.mxu0 0
    %151 = vmatprep.subr.bf16.mxu0 0
    %152 = vmatpush2.bf16.msra.mxu0 0
    %153 = vmatprep.subr.bf16.mxu0 0
    %154 = vmatpush2.bf16.msra.mxu0 0
    %155 = vmatprep.mubr.bf16.mxu0 0
    %156 = vmatmul.mubr.bf16.gmra.mxu0 %v73
    %v157 = vpop.f32.mrf.mxu0
    %v158 = vadd.f32 0.0, %v157
    %v159 = vpop.f32.mrf.mxu0
    %v160 = vpop.f32.mrf.mxu0
    %v161 = vadd.f32 0.0, %v160
    %v162 = vpop.f32.mrf.mxu0
    %163 = vdwg.mxu0
    %v164 = vld [vmem:[%s2] sm:$0x1]
    %v166 = vlaneseq
    %v167 = vshrl.u32 %v166, 7
    %v168 = vsub.s32 0, %v167
    %v169 = vrot.slane %v164, %v168
    %v171 = vmul.f32 %v158, %v169
    %v172 = vmul.f32 %v161, %v169
    %v173 = vld [vmem:[%s3] sm:$0x1]
    %v175 = vlaneseq
    %v176 = vshrl.u32 %v175, 7
    %v177 = vsub.s32 0, %v176
    %v178 = vrot.slane %v173, %v177
    %v180 = vadd.f32 %v171, %v178
    %v181 = vadd.f32 %v172, %v178
    %s182 = smul.u32 0, 128
    %v183 = vlaneseq
    %v184 = vand.u32 %v183, 127
    %v185 = vstv %s182
    %v186 = vadd.s32 %v185, %v184
    %v187 = vld [vmem:[%s4] sm:$0xff]
    %v188 = vld [vmem:[%s4 + $0x8] sm:$0xff]
    %189 = vset.pattern.permute.xlu0 0
    %190 = vperm.xlu0 %189, %v187
    %v191 = vpop.permute.xlu0 %190
    %192 = vset.pattern.permute.xlu0 0
    %193 = vperm.xlu0 %192, %v188
    %v194 = vpop.permute.xlu0 %193
    %vm195 = vcmp.eq.s32.totalorder %v186, %v191
    %vm196 = vcmp.eq.s32.totalorder %v186, %v194
    %v197 = vsub.f32 %v180, 10.5
    %v198 = vsub.f32 %v181, 10.5
    %v199 = vsel %vm195, %v197, %v180
    %v200 = vsel %vm196, %v198, %v181
    %v201 = vpack.c.bf16 %v200, %v199
    %v203 = vunpack.c.l.b16 %v201
    %v204 = vunpack.c.h.b16 %v201
    %v205 = vpack.c.b16 %v203, %v203
    %v206 = vpack.c.b16 %v204, %v204
    %209 = vst [vmem:[#allocation8] sm:$0xf] %v205
    %210 = vst [vmem:[#allocation8 + $0x4] sm:$0xf] %v206
    %v211 = vld [vmem:[#allocation4] sm:$0xff]
    %v212 = vld [vmem:[#allocation4 + $0x8] sm:$0xff]
    %v213 = vsel %vm195, %v180, 0.0
    %v214 = vsel %vm196, %v181, 0.0
    %215 = vadd.xlane.f32.xlu0 %v213
    %v216 = vpop.xlane.xlu0 %215
    %217 = vadd.xlane.f32.xlu0 %v214
    %v218 = vpop.xlane.xlu0 %217
    %v219 = vadd.f32 %v211, %v216
    %v220 = vadd.f32 %v212, %v218
    %vm221 = vcmask 7168
    %222 = vst.msk [vmem:[#allocation4] sm:$0xff] %vm221, %v219
    %223 = vst.msk [vmem:[#allocation4 + $0x8] sm:$0xff] %vm221, %v220
    %224 = vmax.xlane.f32.xlu0 %v199
    %v225 = vpop.xlane.xlu0 %224
    %226 = vmax.xlane.f32.xlu0 %v200
    %v227 = vpop.xlane.xlu0 %226
    %v228 = vld [vmem:[#allocation2] sm:$0xff]
    %v229 = vld [vmem:[#allocation2 + $0x8] sm:$0xff]
    %v230 = vmax.f32 %v228, %v225
    %v231 = vmax.f32 %v229, %v227
    %v232 = vld [vmem:[#allocation3] sm:$0xff]
    %v233 = vld [vmem:[#allocation3 + $0x8] sm:$0xff]
    %v234 = vsub.f32 %v228, %v230
    %v235 = vsub.f32 %v229, %v231
    %v236 = vmul.f32 %v234, 1.442695
    %v237 = vpow.pop %v236
    %v238 = vmul.f32 %v235, 1.442695
    %v239 = vpow.pop %v238
    %v240 = vmul.f32 %v232, %v237
    %v241 = vmul.f32 %v233, %v239
    %243 = vset.pattern.permute.xlu0 0
    %244 = vperm.xlu0 %243, %v230
    %v245 = vpop.permute.xlu0 %244
    %248 = vset.pattern.permute.xlu0 0
    %249 = vperm.xlu0 %248, %v231
    %v250 = vpop.permute.xlu0 %249
    %v252 = vsub.f32 %v199, %v245
    %v253 = vsub.f32 %v200, %v250
    %v254 = vmul.f32 %v252, 1.442695
    %v255 = vpow.pop %v254
    %v256 = vmul.f32 %v253, 1.442695
    %v257 = vpow.pop %v256
    %258 = vadd.xlane.f32.xlu0 %v255
    %v259 = vpop.xlane.xlu0 %258
    %260 = vadd.xlane.f32.xlu0 %v257
    %v261 = vpop.xlane.xlu0 %260
    %v262 = vadd.f32 %v240, %v259
    %v263 = vadd.f32 %v241, %v261
    %264 = vst.msk [vmem:[#allocation3] sm:$0xff] %vm221, %v262
    %265 = vst.msk [vmem:[#allocation3 + $0x8] sm:$0xff] %vm221, %v263
    %266 = vst.msk [vmem:[#allocation2] sm:$0xff] %vm221, %v230
    %267 = vst.msk [vmem:[#allocation2 + $0x8] sm:$0xff] %vm221, %v231
    // Predicated region
    $region30: #{tpu_custom_call.1} parent=1 // pred_check
      %p268 = pneg %p40
    $region31: #{tpu_custom_call.1} parent=1 // pred_check_branch
      %270 = sbr.rel (%p268) target = $region33
    $region32: #{tpu_custom_call.1} parent=1 // pred_region
      %v271 = vld [vmem:[#allocation2] sm:$0xff]
      %v272 = vld [vmem:[#allocation2 + $0x8] sm:$0xff]
      %v273 = vld [vmem:[#allocation3] sm:$0xff]
      %v274 = vld [vmem:[#allocation3 + $0x8] sm:$0xff]
      %v275 = vlog2.pop %v273
      %v276 = vmul.f32 %v275, 0.6931472
      %v277 = vlog2.pop %v274
      %v278 = vmul.f32 %v277, 0.6931472
      %v279 = vadd.f32 %v271, %v276
      %v280 = vadd.f32 %v272, %v278
      %v281 = vld [vmem:[#allocation4] sm:$0xff]
      %v282 = vld [vmem:[#allocation4 + $0x8] sm:$0xff]
      %v283 = vsub.f32 %v281, 10.5
      %v284 = vsub.f32 %v282, 10.5
      %v285 = vmul.f32 %v281, 0.033333335
      %v286 = vmul.f32 %v282, 0.033333335
      %287 = vst.msk [vmem:[%s6] sm:$0xff] %vm221, %v285
      %288 = vst.msk [vmem:[%s6 + $0x8] sm:$0xff] %vm221, %v286
      %v289 = vsub.f32 %v279, %v283
      %v290 = vsub.f32 %v280, %v284
      %291 = vst.msk [vmem:[%s7] sm:$0xff] %vm221, %v289
      %292 = vst.msk [vmem:[%s7 + $0x8] sm:$0xff] %vm221, %v290
      %v293 = vld [vmem:[#allocation2] sm:$0xff]
      %v294 = vld [vmem:[#allocation2 + $0x8] sm:$0xff]
      %vm295 = vcmp.ge.f32.partialorder %v283, %v293
      %vm296 = vcmp.ge.f32.partialorder %v284, %v294
      %v297 = vsel %vm295, 1, 0
      %v298 = vsel %vm296, 1, 0
      %v299 = vcvt.s32.f32 %v297
      %v300 = vcvt.s32.f32 %v298
      %301 = vst.msk [vmem:[%s8] sm:$0xff] %vm221, %v299
      %302 = vst.msk [vmem:[%s8 + $0x8] sm:$0xff] %vm221, %v300
    $region33: #{tpu_custom_call.1} parent=1 // pred_fallthru
      _
    // Predicated region
    $region34: #{tpu_custom_call.1} parent=1 // pred_check
      _
    $region35: #{tpu_custom_call.1} parent=1 // pred_check_branch
      %304 = sbr.rel (0) target = $region37
    $region36: #{tpu_custom_call.1} parent=1 // pred_region
      %s306 = ssub.s32 128, 128
      %307 = vsyncadd [#allocation7], %s306
      %s308 = sshll.u32 [#allocation8], 4
      %s309 = int_to_ptr.vmem [resolvable:$true] %s308
      %314 = dma.vmem_to_hbm [thread:$0]  %s309, 128, %s5, [#allocation7], 64, 64, 4
    $region37: #{tpu_custom_call.1} parent=1 // pred_fallthru
      _
    // Predicated region
    $region38: #{tpu_custom_call.1} parent=1 // pred_check
      _
    $region39: #{tpu_custom_call.1} parent=1 // pred_check_branch
      %316 = sbr.rel (0) target = $region41
    $region40: #{tpu_custom_call.1} parent=1 // pred_region
      _
    $region41: #{tpu_custom_call.1} parent=1 // pred_fallthru
      _
    // Predicated region
    $region42: #{tpu_custom_call.1} parent=1 // pred_check
      _
    $region43: #{tpu_custom_call.1} parent=1 // pred_check_branch
      %318 = sbr.rel (0) target = $region45
    $region44: #{tpu_custom_call.1} parent=1 // pred_region
      _
    $region45: #{tpu_custom_call.1} parent=1 // pred_fallthru
      _
    // Predicated region
    $region46: #{tpu_custom_call.1} parent=1 // pred_check
      _
    $region47: #{tpu_custom_call.1} parent=1 // pred_check_branch
      %320 = sbr.rel (0) target = $region49
    $region48: #{tpu_custom_call.1} parent=1 // pred_region
      _
    $region49: #{tpu_custom_call.1} parent=1 // pred_fallthru
      _
    // Predicated region
    $region50: #{tpu_custom_call.1} parent=1 // pred_check
      _
    $region51: #{tpu_custom_call.1} parent=1 // pred_check_branch
      %322 = sbr.rel (0) target = $region53
    $region52: #{tpu_custom_call.1} parent=1 // pred_region
      %323 = dma.done [#allocation7], 128
    $region53: #{tpu_custom_call.1} parent=1 // pred_fallthru
      _
    // Predicated region
    $region54: #{tpu_custom_call.1} parent=1 // pred_check
      _
    $region55: #{tpu_custom_call.1} parent=1 // pred_check_branch
      %325 = sbr.rel (0) target = $region57
    $region56: #{tpu_custom_call.1} parent=1 // pred_region
      _
    $region57: #{tpu_custom_call.1} parent=1 // pred_fallthru
      _
    // Predicated region
    $region58: #{tpu_custom_call.1} parent=1 // pred_check
      _
    $region59: #{tpu_custom_call.1} parent=1 // pred_check_branch
      %327 = sbr.rel (0) target = $region61
    $region60: #{tpu_custom_call.1} parent=1 // pred_region
      _
    $region61: #{tpu_custom_call.1} parent=1 // pred_fallthru
      _
    // Predicated region
    $region62: #{tpu_custom_call.1} parent=1 // pred_check
      _
    $region63: #{tpu_custom_call.1} parent=1 // pred_check_branch
      %329 = sbr.rel (0) target = $region65
    $region64: #{tpu_custom_call.1} parent=1 // pred_region
      _
    $region65: #{tpu_custom_call.1} parent=1 // pred_fallthru
      _
    %330 = vsyncpa [#allocation6], 1
    %331 = vsyncpa [#allocation7], 1

</llo_original>
